<compile_context>
chip_gen: v5e
topology: v5e:2x2
jax: 0.10.0
libtpu: 0.0.40
codegen_flags: <defaults>
</compile_context>

<pallas_src>
import jax
import jax.numpy as jnp
from jax import lax
from jax.experimental import pallas as pl
from jax.experimental.pallas import tpu as pltpu

KSIZE = 5
PAD = 2


def _convlstm_kernel(xcol_ref, w_ref, b_ref, cell_ref, h_ref, c_ref):
    # xcol_ref : (1, 25*Ctot, TP)  bf16  im2col'd concat([x, hidden]) slice
    # w_ref    : (4*Cc, 25*Ctot)   bf16  folded conv weights
    # b_ref    : (4*Cc, 1)         f32   conv bias (broadcast over lanes)
    # cell_ref : (1, Cc, TP)       f32   previous cell state slice
    # h_ref    : (1, Cc, TP)             output hidden state slice
    # c_ref    : (1, Cc, TP)             output cell state slice
    Cc = cell_ref.shape[1]

    # Single MXU matmul: (4*Cc, K) x (K, TP) -> (4*Cc, TP), f32 accumulation.
    acc = lax.dot_general(
        w_ref[...], xcol_ref[0],
        dimension_numbers=(((1,), (0,)), ((), ())),
        preferred_element_type=jnp.float32,
    )
    acc = acc + b_ref[...].astype(jnp.float32)        # (4*Cc, 1) lane-broadcast

    # Gate split (torch.split order: i, f, o, c(=g)) -- sublane slices, f32 math.
    i_t = jax.nn.sigmoid(acc[0 * Cc:1 * Cc])
    f_t = jax.nn.sigmoid(acc[1 * Cc:2 * Cc])
    o_t = jax.nn.sigmoid(acc[2 * Cc:3 * Cc])
    g_t = jnp.tanh(acc[3 * Cc:4 * Cc])

    c_prev = cell_ref[0].astype(jnp.float32)
    c_t = f_t * c_prev + i_t * g_t
    h_t = o_t * jnp.tanh(c_t)

    h_ref[0] = h_t.astype(h_ref.dtype)                # lane-dense stores (TP >= 128)
    c_ref[0] = c_t.astype(c_ref.dtype)


def _pick_spatial_tile(P):
    """Largest convenient lane-dense tile of the flattened spatial axis."""
    for tp in (2048, 1024, 512, 256, 128):
        if P % tp == 0:
            return tp
    return P  # full extent (always a legal block)


def convlstm_layer(x, hidden, cell, weight, bias):
    """ConvLSTMLayer.forward.

    Args (NCHW, matching PyTorch):
      x      : (B, Cin, H, W)  or None
      hidden : (B, Cc, H, W)
      cell   : (B, Cc, H, W)
      weight : (4*Cc, Cin+Cc, 5, 5)   (PyTorch Conv2d weight, OIHW)
      bias   : (4*Cc,)

    Returns (h_t, c_t), each (B, Cc, H, W).
    """
    B, Cc, H, W = hidden.shape
    Cin = weight.shape[1] - Cc
    if x is None:
        x = jnp.zeros((B, Cin, H, W), dtype=hidden.dtype)
    Ctot = Cin + Cc
    P = H * W
    K = KSIZE * KSIZE * Ctot

    # ---- wrapper-side im2col: fold all 25 taps into the contraction axis ----
    allin = jnp.concatenate([x, hidden], axis=1)                     # (B, Ctot, H, W)
    xpad = jnp.pad(allin, ((0, 0), (0, 0), (PAD, PAD), (PAD, PAD)))
    taps = [xpad[:, :, ky:ky + H, kx:kx + W]
            for ky in range(KSIZE) for kx in range(KSIZE)]           # each (B,Ctot,H,W)
    xcol = jnp.stack(taps, axis=1).reshape(B, K, P)                  # (B, 25*Ctot, H*W)
    xcol = xcol.astype(jnp.bfloat16)                                 # bf16 MXU operand

    # Weight: OIHW -> (O, ky, kx, I) -> (4*Cc, 25*Ctot), matching xcol's tap/channel order.
    w2 = jnp.transpose(weight, (0, 2, 3, 1)).reshape(4 * Cc, K).astype(jnp.bfloat16)
    b2 = bias.reshape(4 * Cc, 1).astype(jnp.float32)
    cell2 = cell.reshape(B, Cc, P)                                   # free reshape (NCHW layout)

    TP = _pick_spatial_tile(P)
    grid = (B, P // TP)

    h2, c2 = pl.pallas_call(
        _convlstm_kernel,
        out_shape=(
            jax.ShapeDtypeStruct((B, Cc, P), hidden.dtype),
            jax.ShapeDtypeStruct((B, Cc, P), cell.dtype),
        ),
        grid_spec=pltpu.PrefetchScalarGridSpec(
            num_scalar_prefetch=0,
            grid=grid,
            in_specs=[
                pl.BlockSpec((1, K, TP), lambda b, p: (b, 0, p)),
                pl.BlockSpec((4 * Cc, K), lambda b, p: (0, 0)),
                pl.BlockSpec((4 * Cc, 1), lambda b, p: (0, 0)),
                pl.BlockSpec((1, Cc, TP), lambda b, p: (b, 0, p)),
            ],
            out_specs=[
                pl.BlockSpec((1, Cc, TP), lambda b, p: (b, 0, p)),
                pl.BlockSpec((1, Cc, TP), lambda b, p: (b, 0, p)),
            ],
        ),
        compiler_params=pltpu.CompilerParams(
            dimension_semantics=("parallel", "parallel"),
            vmem_limit_bytes=32 * 1024 * 1024,
        ),
    )(xcol, w2, b2, cell2)

    # Free reshape back to NCHW (no transpose needed in this layout).
    return h2.reshape(B, Cc, H, W), c2.reshape(B, Cc, H, W)


def _reference(x, hidden, cell, weight, bias):
    """Pure-JAX f32 reference matching the PyTorch module (NCHW)."""
    allin = jnp.concatenate([x, hidden], axis=1)
    conv = lax.conv_general_dilated(
        allin, weight, window_strides=(1, 1), padding=((PAD, PAD), (PAD, PAD)),
        dimension_numbers=("NCHW", "OIHW", "NCHW"),
    ) + bias[None, :, None, None]
    Cc = cell.shape[1]
    xh_i, xh_f, xh_o, xh_c = jnp.split(conv, 4, axis=1)
    i_t = jax.nn.sigmoid(xh_i)
    f_t = jax.nn.sigmoid(xh_f)
    o_t = jax.nn.sigmoid(xh_o)
    g_t = jnp.tanh(xh_c)
    c_t = f_t * cell + i_t * g_t
    h_t = o_t * jnp.tanh(c_t)
    return h_t, c_t


def _reference_bf16_inputs(x, hidden, cell, weight, bias):
    """Same reference but with the conv operands rounded to bf16 (matches the
    kernel's bf16 MXU operands exactly, up to accumulation order)."""
    rb = lambda a: a.astype(jnp.bfloat16).astype(jnp.float32)
    return _reference(rb(x), rb(hidden), cell, rb(weight), bias)


if __name__ == "__main__":
    B, Cin, Cc, H, W = 2, 4, 8, 16, 16

    key = jax.random.PRNGKey(0)
    kx, kh, kc, kw, kb = jax.random.split(key, 5)
    x = jax.random.normal(kx, (B, Cin, H, W), dtype=jnp.float32)
    hidden = jax.random.normal(kh, (B, Cc, H, W), dtype=jnp.float32)
    cell = jax.random.normal(kc, (B, Cc, H, W), dtype=jnp.float32)

    # Deterministic synthetic Conv2d params (shape from nn.Conv2d in __init__).
    fan_in = (Cin + Cc) * KSIZE * KSIZE
    weight = jax.random.normal(kw, (4 * Cc, Cin + Cc, KSIZE, KSIZE),
                               dtype=jnp.float32) / jnp.sqrt(fan_in)
    bias = jax.random.normal(kb, (4 * Cc,), dtype=jnp.float32) * 0.1

    h_t, c_t = convlstm_layer(x, hidden, cell, weight, bias)
    jax.block_until_ready((h_t, c_t))
    assert h_t.shape == (B, Cc, H, W) and c_t.shape == (B, Cc, H, W)

    # Tight check against a reference with identically bf16-rounded conv operands.
    h_rb, c_rb = _reference_bf16_inputs(x, hidden, cell, weight, bias)
    assert jnp.allclose(h_t, h_rb, atol=1e-3, rtol=1e-3)
    assert jnp.allclose(c_t, c_rb, atol=1e-3, rtol=1e-3)

    # Looser sanity check against the pure-f32 reference (gates are bounded, so
    # bf16 operand rounding stays well inside this tolerance).
    h_rf, c_rf = _reference(x, hidden, cell, weight, bias)
    assert jnp.allclose(h_t, h_rf, atol=3e-2, rtol=3e-2)
    assert jnp.allclose(c_t, c_rf, atol=3e-2, rtol=3e-2)

    print("KERNEL_OK")
</pallas_src>

<mosaic_0001>
module attributes {stable_mosaic.version = 11 : i64} {
  func.func @_convlstm_kernel(%arg0: i32, %arg1: i32, %arg2: memref<1x300x256xbf16, #tpu.memory_space<vmem>>, %arg3: memref<32x300xbf16, #tpu.memory_space<vmem>>, %arg4: memref<32x1xf32, #tpu.memory_space<vmem>>, %arg5: memref<1x8x256xf32, #tpu.memory_space<vmem>>, %arg6: memref<1x8x256xf32, #tpu.memory_space<vmem>>, %arg7: memref<1x8x256xf32, #tpu.memory_space<vmem>>) attributes {dimension_semantics = [#tpu.dimension_semantics<parallel>, #tpu.dimension_semantics<parallel>], iteration_bounds = array<i64: 2, 1>, scalar_prefetch = 0 : i64, scratch_operands = 0 : i64, tpu.core_type = #tpu.core_type<tc>, window_params = [{transform_indices = @transform_0, window_bounds = array<i64: 1, 300, 256>}, {pipeline_mode = #tpu.pipeline_mode<synchronous>, transform_indices = @transform_1, window_bounds = array<i64: 32, 300>}, {pipeline_mode = #tpu.pipeline_mode<synchronous>, transform_indices = @transform_2, window_bounds = array<i64: 32, 1>}, {transform_indices = @transform_3, window_bounds = array<i64: 1, 8, 256>}, {transform_indices = @transform_4, window_bounds = array<i64: 1, 8, 256>}, {transform_indices = @transform_5, window_bounds = array<i64: 1, 8, 256>}]} {
    %c0 = arith.constant 0 : index
    %c0_0 = arith.constant 0 : index
    %0 = vector.load %arg3[%c0, %c0_0] : memref<32x300xbf16, #tpu.memory_space<vmem>>, vector<32x300xbf16>
    %c0_1 = arith.constant 0 : index
    %c0_2 = arith.constant 0 : index
    %c0_3 = arith.constant 0 : index
    %1 = vector.load %arg2[%c0_1, %c0_2, %c0_3] : memref<1x300x256xbf16, #tpu.memory_space<vmem>>, vector<1x300x256xbf16>
    %2 = vector.shape_cast %1 : vector<1x300x256xbf16> to vector<300x256xbf16>
    %cst = arith.constant dense<0.000000e+00> : vector<32x256xf32>
    %3 = tpu.matmul %0, %2, %cst {dimension_numbers = #tpu.dot_dimension_numbers<[1], [0], [0], [1], [0, 0, 1, 1], [], []>} : vector<32x300xbf16>, vector<300x256xbf16>, vector<32x256xf32> -> vector<32x256xf32>
    %c0_4 = arith.constant 0 : index
    %c0_5 = arith.constant 0 : index
    %4 = vector.load %arg4[%c0_4, %c0_5] : memref<32x1xf32, #tpu.memory_space<vmem>>, vector<32x1xf32>
    %5 = vector.broadcast %4 : vector<32x1xf32> to vector<32x256xf32>
    %6 = arith.addf %3, %5 : vector<32x256xf32>
    %7 = vector.extract_strided_slice %6 {offsets = [0, 0], sizes = [8, 256], strides = [1, 1]} : vector<32x256xf32> to vector<8x256xf32>
    %8 = arith.negf %7 : vector<8x256xf32>
    %9 = math.exp %8 : vector<8x256xf32>
    %cst_6 = arith.constant 1.000000e+00 : f32
    %10 = vector.broadcast %cst_6 : f32 to vector<8x256xf32>
    %11 = arith.addf %10, %9 : vector<8x256xf32>
    %12 = arith.divf %10, %11 : vector<8x256xf32>
    %13 = vector.extract_strided_slice %6 {offsets = [8, 0], sizes = [8, 256], strides = [1, 1]} : vector<32x256xf32> to vector<8x256xf32>
    %14 = arith.negf %13 : vector<8x256xf32>
    %15 = math.exp %14 : vector<8x256xf32>
    %cst_7 = arith.constant 1.000000e+00 : f32
    %16 = vector.broadcast %cst_7 : f32 to vector<8x256xf32>
    %17 = arith.addf %16, %15 : vector<8x256xf32>
    %18 = arith.divf %16, %17 : vector<8x256xf32>
    %19 = vector.extract_strided_slice %6 {offsets = [16, 0], sizes = [8, 256], strides = [1, 1]} : vector<32x256xf32> to vector<8x256xf32>
    %20 = arith.negf %19 : vector<8x256xf32>
    %21 = math.exp %20 : vector<8x256xf32>
    %cst_8 = arith.constant 1.000000e+00 : f32
    %22 = vector.broadcast %cst_8 : f32 to vector<8x256xf32>
    %23 = arith.addf %22, %21 : vector<8x256xf32>
    %24 = arith.divf %22, %23 : vector<8x256xf32>
    %25 = vector.extract_strided_slice %6 {offsets = [24, 0], sizes = [8, 256], strides = [1, 1]} : vector<32x256xf32> to vector<8x256xf32>
    %26 = math.tanh %25 : vector<8x256xf32>
    %c0_9 = arith.constant 0 : index
    %c0_10 = arith.constant 0 : index
    %c0_11 = arith.constant 0 : index
    %27 = vector.load %arg5[%c0_9, %c0_10, %c0_11] : memref<1x8x256xf32, #tpu.memory_space<vmem>>, vector<1x8x256xf32>
    %28 = vector.shape_cast %27 : vector<1x8x256xf32> to vector<8x256xf32>
    %29 = arith.mulf %18, %28 : vector<8x256xf32>
    %30 = arith.mulf %12, %26 : vector<8x256xf32>
    %31 = arith.addf %29, %30 : vector<8x256xf32>
    %32 = math.tanh %31 : vector<8x256xf32>
    %33 = arith.mulf %24, %32 : vector<8x256xf32>
    %c0_12 = arith.constant 0 : index
    %c0_13 = arith.constant 0 : index
    %c0_14 = arith.constant 0 : index
    %34 = vector.load %arg6[%c0_12, %c0_13, %c0_14] : memref<1x8x256xf32, #tpu.memory_space<vmem>>, vector<1x8x256xf32>
    %35 = vector.shape_cast %34 : vector<1x8x256xf32> to vector<8x256xf32>
    %36 = vector.shape_cast %33 : vector<8x256xf32> to vector<1x8x256xf32>
    tpu.vector_store %arg6[%c0_12, %c0_13, %c0_14], %36 {strides = array<i32>} : memref<1x8x256xf32, #tpu.memory_space<vmem>>, vector<1x8x256xf32>,
    %c0_15 = arith.constant 0 : index
    %c0_16 = arith.constant 0 : index
    %c0_17 = arith.constant 0 : index
    %37 = vector.load %arg7[%c0_15, %c0_16, %c0_17] : memref<1x8x256xf32, #tpu.memory_space<vmem>>, vector<1x8x256xf32>
    %38 = vector.shape_cast %37 : vector<1x8x256xf32> to vector<8x256xf32>
    %39 = vector.shape_cast %31 : vector<8x256xf32> to vector<1x8x256xf32>
    tpu.vector_store %arg7[%c0_15, %c0_16, %c0_17], %39 {strides = array<i32>} : memref<1x8x256xf32, #tpu.memory_space<vmem>>, vector<1x8x256xf32>,
    return
  }
  func.func @transform_0(%arg0: i32, %arg1: i32) -> (i32, i32, i32) {
    %c0_i32 = arith.constant 0 : i32
    %c0_i32_0 = arith.constant 0 : i32
    return %arg0, %c0_i32, %arg1 : i32, i32, i32
  }
  func.func @transform_1(%arg0: i32, %arg1: i32) -> (i32, i32) {
    %c0_i32 = arith.constant 0 : i32
    %c0_i32_0 = arith.constant 0 : i32
    %c0_i32_1 = arith.constant 0 : i32
    return %c0_i32, %c0_i32_0 : i32, i32
  }
  func.func @transform_2(%arg0: i32, %arg1: i32) -> (i32, i32) {
    %c0_i32 = arith.constant 0 : i32
    %c0_i32_0 = arith.constant 0 : i32
    %c0_i32_1 = arith.constant 0 : i32
    return %c0_i32, %c0_i32_0 : i32, i32
  }
  func.func @transform_3(%arg0: i32, %arg1: i32) -> (i32, i32, i32) {
    %c0_i32 = arith.constant 0 : i32
    %c0_i32_0 = arith.constant 0 : i32
    return %arg0, %c0_i32, %arg1 : i32, i32, i32
  }
  func.func @transform_4(%arg0: i32, %arg1: i32) -> (i32, i32, i32) {
    %c0_i32 = arith.constant 0 : i32
    %c0_i32_0 = arith.constant 0 : i32
    return %arg0, %c0_i32, %arg1 : i32, i32, i32
  }
  func.func @transform_5(%arg0: i32, %arg1: i32) -> (i32, i32, i32) {
    %c0_i32 = arith.constant 0 : i32
    %c0_i32_0 = arith.constant 0 : i32
    return %arg0, %c0_i32, %arg1 : i32, i32, i32
  }
}

</mosaic_0001>

<llo_original>
// kernel: tpu_custom_call.1
$region0: #{tpu_custom_call.1}
  #allocation0 [shape = 'u32[]', space=smem, size = 0x4, offset = 0x4, fixed_abs, tag = 'smem constant byte address 0x4 - core index']
  #allocation1 [shape = 'u32[72,128]{1,0:T(1,128)}', space=vmem, size = 0x9000, scoped, tag = 'internal scratch']
  %s0 = inlined_call_operand.vmem [shape: bf16[2,300,256], index: 0, kind: input, shape index: {}]
  %s1 = inlined_call_operand.vmem [shape: bf16[32,300], index: 1, kind: input, shape index: {}]
  %s2 = inlined_call_operand.vmem [shape: f32[32,1], index: 2, kind: input, shape index: {}]
  %s3 = inlined_call_operand.vmem [shape: f32[2,8,256], index: 3, kind: input, shape index: {}]
  %s4 = inlined_call_operand.hbm [shape: f32[2,8,256], index: 4, kind: output, shape index: {0}]
  %s5 = inlined_call_operand.hbm [shape: f32[2,8,256], index: 5, kind: output, shape index: {1}]
  %6 = xla_tuple %s4, %s5
  %s7 = sld [smem:[#allocation0]]
  $region57: #{tpu_custom_call.1} parent=0
    _
  %s9 = ssub.s32 1, %s7
  %s10 = scalar_select 0, %s9, %s7
  $region1: #{tpu_custom_call.1} parent=0
    #allocation2 [shape = 'u8[16384]{0}', space=vmem, size = 0x4000, scoped, tag = 'output window, operand 0']
    #allocation3 [shape = 's32[2]{0}', space=sflag, size = 0x8, scoped, tag = 'scoped memory for tpu_custom_call.1']
    #allocation4 [shape = 'u8[16384]{0}', space=vmem, size = 0x4000, scoped, tag = 'output window, operand 1']
    #allocation5 [shape = 's32[2]{0}', space=sflag, size = 0x8, scoped, tag = 'scoped memory for tpu_custom_call.1']
    %11 = vsyncpa [#allocation3], 0
    %s12 = scalar_lea.sflag [#allocation3], 1
    %13 = vsyncpa %s12, 0
    %14 = vsyncpa [#allocation5], 0
    %s15 = scalar_lea.sflag [#allocation5], 1
    %16 = vsyncpa %s15, 0
    loop: start=0, step=1, limit=4
    $region2: #{tpu_custom_call.1} parent=1 // loop_pre_header
      _
    $region3: #{tpu_custom_call.1} parent=1 // loop_header
      %s18 = sphi 0, %s22
      %p19 = scmp.ge.s32.totalorder %s18, 4
      %s25 = sphi 0, %s37
      %s26 = sphi 0, %s33
      %s27 = sphi 0, %s25
      %s28 = sphi 0, %s26
      %s29 = sphi 0, %s27
      %s30 = sphi 0, %s28
      %s42 = sphi 0, %s44
      %s45 = sphi 0, %s42
      %s46 = sphi 0, %s45
      %s62 = sphi 0, %s46
      %s66 = sphi 0, %s66
      %s68 = sphi 0, %s66
      %s69 = sphi 0, %s68
      %s83 = sphi 0, %s69
      %s87 = sphi 0, %s87
      %s89 = sphi 0, %s87
      %s90 = sphi 0, %s89
      %s104 = sphi 0, %s90
      %s112 = sphi 0, %s114
      %s115 = sphi 0, %s112
      %s116 = sphi 0, %s115
      %s132 = sphi 0, %s116
      %s140 = sphi 0, %s142
      %s143 = sphi 0, %s140
      %s144 = sphi 0, %s143
      %s160 = sphi 0, %s144
      %s168 = sphi 0, %s170
      %s171 = sphi 0, %s168
      %s172 = sphi 0, %s171
      %s188 = sphi 0, %s172
    $region4: #{tpu_custom_call.1} parent=1 // loop_header_branch
      %21 = sbr.rel (%p19) target = $region8
    $region5: #{tpu_custom_call.1} parent=1 // loop_body
      %s23 = ssub.s32 %s18, 1
      %s24 = ssub.s32 %s18, 2
      %s31 = sadd.s32 1, %s26
      %p32 = scmp.ge.s32.totalorder %s31, 1
      %s33 = scalar_select %p32, 0, %s31
      %s34 = sadd.s32 1, %s25
      %s35 = scalar_select %p32, %s34, %s25
      %p36 = scmp.ge.s32.totalorder %s35, 2
      %s37 = scalar_select %p36, 0, %s35
      %s38 = ssub.s32 %s25, %s37
      %s39 = ssub.s32 %s26, %s33
      %s40 = sor.u32 %s38, %s39
      %p41 = scmp.eq.s32.totalorder %s40, 0
      %s43 = sadd.s32 %s42, 1
      %s44 = scalar_select %p41, %s42, %s43
      %p47 = pneg %p41
      %p48 = scmp.eq.s32.totalorder %s18, 1
      %p49 = por %p47, %p48
      %p50 = scmp.ne.s32.totalorder %s42, %s45
      %p51 = scmp.eq.s32.totalorder %s18, 0
      %p52 = por %p50, %p51
      %p53 = scmp.ne.s32.totalorder %s42, %s45
      %p54 = scmp.eq.s32.totalorder %s23, 1
      %p55 = por %p53, %p54
      %p56 = scmp.ne.s32.totalorder %s45, %s46
      %p57 = scmp.eq.s32.totalorder %s23, 0
      %p58 = por %p56, %p57
      %p59 = scmp.ne.s32.totalorder %s45, %s46
      %p60 = scmp.eq.s32.totalorder %s24, 1
      %p61 = por %p59, %p60
      %p63 = scmp.ne.s32.totalorder %s46, %s62
      %p64 = scmp.eq.s32.totalorder %s24, 0
      %p65 = por %p63, %p64
      %s67 = sadd.s32 %s66, 1
      %p70 = scmp.eq.s32.totalorder %s18, 1
      %p71 = scmp.ne.s32.totalorder %s66, %s68
      %p72 = scmp.eq.s32.totalorder %s18, 0
      %p73 = por %p71, %p72
      %p74 = scmp.ne.s32.totalorder %s66, %s68
      %p75 = scmp.eq.s32.totalorder %s23, 1
      %p76 = por %p74, %p75
      %p77 = scmp.ne.s32.totalorder %s68, %s69
      %p78 = scmp.eq.s32.totalorder %s23, 0
      %p79 = por %p77, %p78
      %p80 = scmp.ne.s32.totalorder %s68, %s69
      %p81 = scmp.eq.s32.totalorder %s24, 1
      %p82 = por %p80, %p81
      %p84 = scmp.ne.s32.totalorder %s69, %s83
      %p85 = scmp.eq.s32.totalorder %s24, 0
      %p86 = por %p84, %p85
      %s88 = sadd.s32 %s87, 1
      %p91 = scmp.eq.s32.totalorder %s18, 1
      %p92 = scmp.ne.s32.totalorder %s87, %s89
      %p93 = scmp.eq.s32.totalorder %s18, 0
      %p94 = por %p92, %p93
      %p95 = scmp.ne.s32.totalorder %s87, %s89
      %p96 = scmp.eq.s32.totalorder %s23, 1
      %p97 = por %p95, %p96
      %p98 = scmp.ne.s32.totalorder %s89, %s90
      %p99 = scmp.eq.s32.totalorder %s23, 0
      %p100 = por %p98, %p99
      %p101 = scmp.ne.s32.totalorder %s89, %s90
      %p102 = scmp.eq.s32.totalorder %s24, 1
      %p103 = por %p101, %p102
      %p105 = scmp.ne.s32.totalorder %s90, %s104
      %p106 = scmp.eq.s32.totalorder %s24, 0
      %p107 = por %p105, %p106
      %s108 = ssub.s32 %s25, %s37
      %s109 = ssub.s32 %s26, %s33
      %s110 = sor.u32 %s108, %s109
      %p111 = scmp.eq.s32.totalorder %s110, 0
      %s113 = sadd.s32 %s112, 1
      %s114 = scalar_select %p111, %s112, %s113
      %p117 = pneg %p111
      %p118 = scmp.eq.s32.totalorder %s18, 1
      %p119 = por %p117, %p118
      %p120 = scmp.ne.s32.totalorder %s112, %s115
      %p121 = scmp.eq.s32.totalorder %s18, 0
      %p122 = por %p120, %p121
      %p123 = scmp.ne.s32.totalorder %s112, %s115
      %p124 = scmp.eq.s32.totalorder %s23, 1
      %p125 = por %p123, %p124
      %p126 = scmp.ne.s32.totalorder %s115, %s116
      %p127 = scmp.eq.s32.totalorder %s23, 0
      %p128 = por %p126, %p127
      %p129 = scmp.ne.s32.totalorder %s115, %s116
      %p130 = scmp.eq.s32.totalorder %s24, 1
      %p131 = por %p129, %p130
      %p133 = scmp.ne.s32.totalorder %s116, %s132
      %p134 = scmp.eq.s32.totalorder %s24, 0
      %p135 = por %p133, %p134
      %s136 = ssub.s32 %s25, %s37
      %s137 = ssub.s32 %s26, %s33
      %s138 = sor.u32 %s136, %s137
      %p139 = scmp.eq.s32.totalorder %s138, 0
      %s141 = sadd.s32 %s140, 1
      %s142 = scalar_select %p139, %s140, %s141
      %p145 = pneg %p139
      %p146 = scmp.eq.s32.totalorder %s18, 1
      %p147 = por %p145, %p146
      %p148 = scmp.ne.s32.totalorder %s140, %s143
      %p149 = scmp.eq.s32.totalorder %s18, 0
      %p150 = por %p148, %p149
      %p151 = scmp.ne.s32.totalorder %s140, %s143
      %p152 = scmp.eq.s32.totalorder %s23, 1
      %p153 = por %p151, %p152
      %p154 = scmp.ne.s32.totalorder %s143, %s144
      %p155 = scmp.eq.s32.totalorder %s23, 0
      %p156 = por %p154, %p155
      %p157 = scmp.ne.s32.totalorder %s143, %s144
      %p158 = scmp.eq.s32.totalorder %s24, 1
      %p159 = por %p157, %p158
      %p161 = scmp.ne.s32.totalorder %s144, %s160
      %p162 = scmp.eq.s32.totalorder %s24, 0
      %p163 = por %p161, %p162
      %s164 = ssub.s32 %s25, %s37
      %s165 = ssub.s32 %s26, %s33
      %s166 = sor.u32 %s164, %s165
      %p167 = scmp.eq.s32.totalorder %s166, 0
      %s169 = sadd.s32 %s168, 1
      %s170 = scalar_select %p167, %s168, %s169
      %p173 = pneg %p167
      %p174 = scmp.eq.s32.totalorder %s18, 1
      %p175 = por %p173, %p174
      %p176 = scmp.ne.s32.totalorder %s168, %s171
      %p177 = scmp.eq.s32.totalorder %s18, 0
      %p178 = por %p176, %p177
      %p179 = scmp.ne.s32.totalorder %s168, %s171
      %p180 = scmp.eq.s32.totalorder %s23, 1
      %p181 = por %p179, %p180
      %p182 = scmp.ne.s32.totalorder %s171, %s172
      %p183 = scmp.eq.s32.totalorder %s23, 0
      %p184 = por %p182, %p183
      %p185 = scmp.ne.s32.totalorder %s171, %s172
      %p186 = scmp.eq.s32.totalorder %s24, 1
      %p187 = por %p185, %p186
      %p189 = scmp.ne.s32.totalorder %s172, %s188
      %p190 = scmp.eq.s32.totalorder %s24, 0
      %p191 = por %p189, %p190
      %p192 = scmp.le.s32.totalorder 1, %s18
      %p193 = scmp.lt.s32.totalorder %s18, 3
      %p194 = pnand %p192, %p193
      %p195 = pneg %p194
      // Predicated region
      $region9: #{tpu_custom_call.1} parent=5 // pred_check
        _
      $region10: #{tpu_custom_call.1} parent=5 // pred_check_branch
        %197 = sbr.rel (%p194) target = $region12
      $region11: #{tpu_custom_call.1} parent=5 // pred_region
        %s198 = ssub.s32 %s18, 1
        // Predicated region
        $region13: #{tpu_custom_call.1} parent=11 // pred_check
          %p199 = pneg %p79
        $region14: #{tpu_custom_call.1} parent=11 // pred_check_branch
          %201 = sbr.rel (%p199) target = $region16
        $region15: #{tpu_custom_call.1} parent=11 // pred_region
          _
        $region16: #{tpu_custom_call.1} parent=11 // pred_fallthru
          _
        // Predicated region
        $region17: #{tpu_custom_call.1} parent=11 // pred_check
          %p202 = pneg %p100
        $region18: #{tpu_custom_call.1} parent=11 // pred_check_branch
          %204 = sbr.rel (%p202) target = $region20
        $region19: #{tpu_custom_call.1} parent=11 // pred_region
          _
        $region20: #{tpu_custom_call.1} parent=11 // pred_fallthru
          _
      $region12: #{tpu_custom_call.1} parent=5 // pred_fallthru
        _
      %p205 = scmp.lt.s32.totalorder %s18, 2
      // Predicated region
      $region21: #{tpu_custom_call.1} parent=5 // pred_check
        %p206 = pneg %p205
      $region22: #{tpu_custom_call.1} parent=5 // pred_check_branch
        %208 = sbr.rel (%p206) target = $region24
      $region23: #{tpu_custom_call.1} parent=5 // pred_region
        // Predicated region
        $region25: #{tpu_custom_call.1} parent=23 // pred_check
          %p209 = pneg %p52
        $region26: #{tpu_custom_call.1} parent=23 // pred_check_branch
          %211 = sbr.rel (%p209) target = $region28
        $region27: #{tpu_custom_call.1} parent=23 // pred_region
          %s212 = smul.u32 2, %s26
          %p213 = scmp.lt.s32.totalorder %s25, 1
          %s214 = scalar_select %p213, %s25, 1
          %p215 = scmp.lt.s32.totalorder %s212, 1
          %s216 = scalar_select %p215, %s212, 1
          %s217 = smul.addr %s214, 76
          %s218 = sadd.s32 %s216, %s217
          %s219 = smul.addr %s218, 4
          %s220 = scalar_lea.vmem %s0, %s219
          %s221 = smul.u32 2, %s26
        $region28: #{tpu_custom_call.1} parent=23 // pred_fallthru
          _
        // Predicated region
        $region29: #{tpu_custom_call.1} parent=23 // pred_check
          %p222 = pneg %p122
        $region30: #{tpu_custom_call.1} parent=23 // pred_check_branch
          %224 = sbr.rel (%p222) target = $region32
        $region31: #{tpu_custom_call.1} parent=23 // pred_region
          %s225 = smul.u32 2, %s26
          %p226 = scmp.lt.s32.totalorder %s25, 1
          %s227 = scalar_select %p226, %s25, 1
          %p228 = scmp.lt.s32.totalorder %s225, 1
          %s229 = scalar_select %p228, %s225, 1
          %s230 = smul.addr %s227, 2
          %s231 = sadd.s32 %s229, %s230
          %s232 = smul.addr %s231, 8
          %s233 = scalar_lea.vmem %s3, %s232
          %s234 = smul.u32 2, %s26
        $region32: #{tpu_custom_call.1} parent=23 // pred_fallthru
          _
      $region24: #{tpu_custom_call.1} parent=5 // pred_fallthru
        _
      %p235 = scmp.le.s32.totalorder 1, %s18
      %p236 = scmp.lt.s32.totalorder %s18, 3
      %p237 = pnand %p235, %p236
      %p238 = pneg %p237
      // Predicated region
      $region33: #{tpu_custom_call.1} parent=5 // pred_check
        _
      $region34: #{tpu_custom_call.1} parent=5 // pred_check_branch
        %240 = sbr.rel (%p237) target = $region36
      $region35: #{tpu_custom_call.1} parent=5 // pred_region
        %s241 = ssub.s32 %s18, 1
        %s242 = smul.u32 2, %s28
        %p243 = scmp.lt.s32.totalorder %s27, 1
        %s244 = scalar_select %p243, %s27, 1
        %p245 = scmp.lt.s32.totalorder %s242, 1
        %s246 = scalar_select %p245, %s242, 1
        %s247 = smul.addr %s244, 76
        %s248 = sadd.s32 %s246, %s247
        %s249 = smul.addr %s248, 4
        %s250 = scalar_lea.vmem %s0, %s249
        %p251 = pneg %p58
        %p252 = pneg %p55
        %p253 = pneg %p79
        %p254 = pneg %p76
        %p255 = pneg %p100
        %p256 = pneg %p97
        %s257 = smul.u32 2, %s28
        %p258 = scmp.lt.s32.totalorder %s27, 1
        %s259 = scalar_select %p258, %s27, 1
        %p260 = scmp.lt.s32.totalorder %s257, 1
        %s261 = scalar_select %p260, %s257, 1
        %s262 = smul.addr %s259, 2
        %s263 = sadd.s32 %s261, %s262
        %s264 = smul.addr %s263, 8
        %s265 = scalar_lea.vmem %s3, %s264
        %p266 = pneg %p128
        %p267 = pneg %p125
        %p268 = pneg %p156
        %p269 = pneg %p153
        %s270 = sand.u32 %s143, 1
        %s271 = scalar_lea.sflag [#allocation3], %s270
        %s272 = sand.u32 %s143, 1
        %s273 = smul.addr %s272, 16
        %s274 = scalar_lea.vmem [#allocation2], %s273
        %p275 = pneg %p184
        %p276 = pneg %p181
        %s277 = sand.u32 %s171, 1
        %s278 = scalar_lea.sflag [#allocation5], %s277
        %s279 = sand.u32 %s171, 1
        %s280 = smul.addr %s279, 16
        %s281 = scalar_lea.vmem [#allocation4], %s280
        %s282 = smul.u32 2, %s28
        %p283 = scmp.lt.s32.totalorder %s27, 1
        %s284 = scalar_select %p283, %s27, 1
        %p285 = scmp.lt.s32.totalorder %s282, 1
        %s286 = scalar_select %p285, %s282, 1
        %s287 = smul.addr %s284, 76
        %s288 = sadd.s32 %s286, %s287
        %s289 = smul.addr %s288, 4
        %s290 = scalar_lea.vmem %s0, %s289
        %s291 = smul.u32 2, %s28
        %s292 = smul.u32 2, %s28
        %p293 = scmp.lt.s32.totalorder %s27, 1
        %s294 = scalar_select %p293, %s27, 1
        %p295 = scmp.lt.s32.totalorder %s292, 1
        %s296 = scalar_select %p295, %s292, 1
        %s297 = smul.addr %s294, 2
        %s298 = sadd.s32 %s296, %s297
        %s299 = smul.addr %s298, 8
        %s300 = scalar_lea.vmem %s3, %s299
        %s301 = smul.u32 2, %s28
        %s302 = smul.u32 2, %s28
        %s303 = smul.u32 2, %s28
        %v305 = vld [vmem:[%s1] sm:$0xff]
        %v306 = vld [vmem:[%s1 + $0x8] sm:$0xf]
        %v307 = vld [vmem:[%s1 + $0xc] sm:$0xff]
        %v308 = vld [vmem:[%s1 + $0x14] sm:$0xf]
        %v309 = vld [vmem:[%s1 + $0x18] sm:$0xff]
        %v310 = vld [vmem:[%s1 + $0x20] sm:$0xf]
        %v311 = vld [vmem:[%s1 + $0x24] sm:$0xff]
        %v312 = vld [vmem:[%s1 + $0x2c] sm:$0xf]
        %v313 = vld [vmem:[%s290] sm:$0xff]
        %v314 = vld [vmem:[%s290 + $0x8] sm:$0xff]
        %v315 = vld [vmem:[%s290 + $0x10] sm:$0xff]
        %v316 = vld [vmem:[%s290 + $0x18] sm:$0xff]
        %v317 = vld [vmem:[%s290 + $0x20] sm:$0xff]
        %v318 = vld [vmem:[%s290 + $0x28] sm:$0xff]
        %v319 = vld [vmem:[%s290 + $0x30] sm:$0xff]
        %v320 = vld [vmem:[%s290 + $0x38] sm:$0xff]
        %v321 = vld [vmem:[%s290 + $0x40] sm:$0xff]
        %v322 = vld [vmem:[%s290 + $0x48] sm:$0xff]
        %v323 = vld [vmem:[%s290 + $0x50] sm:$0xff]
        %v324 = vld [vmem:[%s290 + $0x58] sm:$0xff]
        %v325 = vld [vmem:[%s290 + $0x60] sm:$0xff]
        %v326 = vld [vmem:[%s290 + $0x68] sm:$0xff]
        %v327 = vld [vmem:[%s290 + $0x70] sm:$0xff]
        %v328 = vld [vmem:[%s290 + $0x78] sm:$0xff]
        %v329 = vld [vmem:[%s290 + $0x80] sm:$0xff]
        %v330 = vld [vmem:[%s290 + $0x88] sm:$0xff]
        %v331 = vld [vmem:[%s290 + $0x90] sm:$0xff]
        %v332 = vld [vmem:[%s290 + $0x98] sm:$0xff]
        %v333 = vld [vmem:[%s290 + $0xa0] sm:$0xff]
        %v334 = vld [vmem:[%s290 + $0xa8] sm:$0xff]
        %v335 = vld [vmem:[%s290 + $0xb0] sm:$0xff]
        %v336 = vld [vmem:[%s290 + $0xb8] sm:$0xff]
        %v337 = vld [vmem:[%s290 + $0xc0] sm:$0xff]
        %v338 = vld [vmem:[%s290 + $0xc8] sm:$0xff]
        %v339 = vld [vmem:[%s290 + $0xd0] sm:$0xff]
        %v340 = vld [vmem:[%s290 + $0xd8] sm:$0xff]
        %v341 = vld [vmem:[%s290 + $0xe0] sm:$0xff]
        %v342 = vld [vmem:[%s290 + $0xe8] sm:$0xff]
        %v343 = vld [vmem:[%s290 + $0xf0] sm:$0xff]
        %v344 = vld [vmem:[%s290 + $0xf8] sm:$0xff]
        %v345 = vld [vmem:[%s290 + $0x100] sm:$0xff]
        %v346 = vld [vmem:[%s290 + $0x108] sm:$0xff]
        %v347 = vld [vmem:[%s290 + $0x110] sm:$0xff]
        %v348 = vld [vmem:[%s290 + $0x118] sm:$0xff]
        %v349 = vld [vmem:[%s290 + $0x120] sm:$0xff]
        %v350 = vld [vmem:[%s290 + $0x128] sm:$0x33]
        %v351 = vld [vmem:[%s2] sm:$0xff]
        %v352 = vld [vmem:[%s2 + $0x8] sm:$0xff]
        %v353 = vld [vmem:[%s2 + $0x10] sm:$0xff]
        %v354 = vld [vmem:[%s2 + $0x18] sm:$0xff]
        %356 = vset.pattern.permute.xlu0 0
        %357 = vperm.xlu0 %356, %v351
        %v358 = vpop.permute.xlu0 %357
        %361 = vset.pattern.permute.xlu0 0
        %362 = vperm.xlu0 %361, %v352
        %v363 = vpop.permute.xlu0 %362
        %366 = vset.pattern.permute.xlu0 0
        %367 = vperm.xlu0 %366, %v353
        %v368 = vpop.permute.xlu0 %367
        %371 = vset.pattern.permute.xlu0 0
        %372 = vperm.xlu0 %371, %v354
        %v373 = vpop.permute.xlu0 %372
        %v383 = vunpack.c.l.b16 %v305
        %v384 = vunpack.c.h.b16 %v305
        %v385 = vunpack.c.l.b16 %v306
        %v386 = vunpack.c.l.b16 %v307
        %v387 = vunpack.c.h.b16 %v307
        %v388 = vunpack.c.l.b16 %v308
        %v389 = vunpack.c.l.b16 %v309
        %v390 = vunpack.c.h.b16 %v309
        %v391 = vunpack.c.l.b16 %v310
        %v392 = vunpack.c.l.b16 %v311
        %v393 = vunpack.c.h.b16 %v311
        %v394 = vunpack.c.l.b16 %v312
        %v395 = vpack.c.b16 %v386, %v383
        %v396 = vpack.c.b16 %v387, %v384
        %v397 = vpack.c.b16 %v388, %v385
        %v398 = vpack.c.b16 %v392, %v389
        %v399 = vpack.c.b16 %v393, %v390
        %v400 = vpack.c.b16 %v394, %v391
        %v443 = vunpack.c.l.b16 %v313
        %v444 = vunpack.c.h.b16 %v313
        %v445 = vunpack.c.l.b16 %v314
        %v446 = vunpack.c.h.b16 %v314
        %v447 = vunpack.c.l.b16 %v315
        %v448 = vunpack.c.h.b16 %v315
        %v449 = vunpack.c.l.b16 %v316
        %v450 = vunpack.c.h.b16 %v316
        %v451 = vunpack.c.l.b16 %v317
        %v452 = vunpack.c.h.b16 %v317
        %v453 = vunpack.c.l.b16 %v318
        %v454 = vunpack.c.h.b16 %v318
        %v455 = vunpack.c.l.b16 %v319
        %v456 = vunpack.c.h.b16 %v319
        %v457 = vunpack.c.l.b16 %v320
        %v458 = vunpack.c.h.b16 %v320
        %v459 = vunpack.c.l.b16 %v321
        %v460 = vunpack.c.h.b16 %v321
        %v461 = vunpack.c.l.b16 %v322
        %v462 = vunpack.c.h.b16 %v322
        %v463 = vunpack.c.l.b16 %v323
        %v464 = vunpack.c.h.b16 %v323
        %v465 = vunpack.c.l.b16 %v324
        %v466 = vunpack.c.h.b16 %v324
        %v467 = vunpack.c.l.b16 %v325
        %v468 = vunpack.c.h.b16 %v325
        %v469 = vunpack.c.l.b16 %v326
        %v470 = vunpack.c.h.b16 %v326
        %v471 = vunpack.c.l.b16 %v327
        %v472 = vunpack.c.h.b16 %v327
        %v473 = vunpack.c.l.b16 %v328
        %v474 = vunpack.c.h.b16 %v328
        %v475 = vunpack.c.l.b16 %v329
        %v476 = vunpack.c.h.b16 %v329
        %v477 = vunpack.c.l.b16 %v330
        %v478 = vunpack.c.h.b16 %v330
        %v479 = vunpack.c.l.b16 %v331
        %v480 = vunpack.c.h.b16 %v331
        %v481 = vunpack.c.l.b16 %v332
        %v482 = vunpack.c.h.b16 %v332
        %v483 = vunpack.c.l.b16 %v333
        %v484 = vunpack.c.h.b16 %v333
        %v485 = vunpack.c.l.b16 %v334
        %v486 = vunpack.c.h.b16 %v334
        %v487 = vunpack.c.l.b16 %v335
        %v488 = vunpack.c.h.b16 %v335
        %v489 = vunpack.c.l.b16 %v336
        %v490 = vunpack.c.h.b16 %v336
        %v491 = vunpack.c.l.b16 %v337
        %v492 = vunpack.c.h.b16 %v337
        %v493 = vunpack.c.l.b16 %v338
        %v494 = vunpack.c.h.b16 %v338
        %v495 = vunpack.c.l.b16 %v339
        %v496 = vunpack.c.h.b16 %v339
        %v497 = vunpack.c.l.b16 %v340
        %v498 = vunpack.c.h.b16 %v340
        %v499 = vunpack.c.l.b16 %v341
        %v500 = vunpack.c.h.b16 %v341
        %v501 = vunpack.c.l.b16 %v342
        %v502 = vunpack.c.h.b16 %v342
        %v503 = vunpack.c.l.b16 %v343
        %v504 = vunpack.c.h.b16 %v343
        %v505 = vunpack.c.l.b16 %v344
        %v506 = vunpack.c.h.b16 %v344
        %v507 = vunpack.c.l.b16 %v345
        %v508 = vunpack.c.h.b16 %v345
        %v509 = vunpack.c.l.b16 %v346
        %v510 = vunpack.c.h.b16 %v346
        %v511 = vunpack.c.l.b16 %v347
        %v512 = vunpack.c.h.b16 %v347
        %v513 = vunpack.c.l.b16 %v348
        %v514 = vunpack.c.h.b16 %v348
        %v515 = vunpack.c.l.b16 %v349
        %v516 = vunpack.c.h.b16 %v349
        %v517 = vunpack.c.l.b16 %v350
        %v518 = vunpack.c.h.b16 %v350
        %v519 = vpack.c.b16 %v445, %v443
        %v520 = vpack.c.b16 %v446, %v444
        %v521 = vpack.c.b16 %v449, %v447
        %v522 = vpack.c.b16 %v450, %v448
        %v523 = vpack.c.b16 %v453, %v451
        %v524 = vpack.c.b16 %v454, %v452
        %v525 = vpack.c.b16 %v457, %v455
        %v526 = vpack.c.b16 %v458, %v456
        %v527 = vpack.c.b16 %v461, %v459
        %v528 = vpack.c.b16 %v462, %v460
        %v529 = vpack.c.b16 %v465, %v463
        %v530 = vpack.c.b16 %v466, %v464
        %v531 = vpack.c.b16 %v469, %v467
        %v532 = vpack.c.b16 %v470, %v468
        %v533 = vpack.c.b16 %v473, %v471
        %v534 = vpack.c.b16 %v474, %v472
        %v535 = vpack.c.b16 %v477, %v475
        %v536 = vpack.c.b16 %v478, %v476
        %v537 = vpack.c.b16 %v481, %v479
        %v538 = vpack.c.b16 %v482, %v480
        %v539 = vpack.c.b16 %v485, %v483
        %v540 = vpack.c.b16 %v486, %v484
        %v541 = vpack.c.b16 %v489, %v487
        %v542 = vpack.c.b16 %v490, %v488
        %v543 = vpack.c.b16 %v493, %v491
        %v544 = vpack.c.b16 %v494, %v492
        %v545 = vpack.c.b16 %v497, %v495
        %v546 = vpack.c.b16 %v498, %v496
        %v547 = vpack.c.b16 %v501, %v499
        %v548 = vpack.c.b16 %v502, %v500
        %v549 = vpack.c.b16 %v505, %v503
        %v550 = vpack.c.b16 %v506, %v504
        %v551 = vpack.c.b16 %v509, %v507
        %v552 = vpack.c.b16 %v510, %v508
        %v553 = vpack.c.b16 %v513, %v511
        %v554 = vpack.c.b16 %v514, %v512
        %v555 = vpack.c.b16 %v517, %v515
        %v556 = vpack.c.b16 %v518, %v516
        %vm593 = vcmask 359424
        %v595 = vsel %vm593, %v397, 0
        %v598 = vsel %vm593, %v400, 0
        %vm600 = vcmask 1045504
        %v602 = vsel %vm600, %v555, 0
        %v605 = vsel %vm600, %v556, 0
        %607 = vmatpush.bf16.msra.mxu0 %v533
        %608 = vmatpush.bf16.msra.mxu0 %v531
        %609 = vmatpush.bf16.msra.mxu0 %v529
        %610 = vmatpush.bf16.msra.mxu0 %v527
        %611 = vmatpush.bf16.msra.mxu0 %v525
        %612 = vmatpush.bf16.msra.mxu0 %v523
        %613 = vmatpush.bf16.msra.mxu0 %v521
        %614 = vmatpush.bf16.msra.mxu0 %v519
        %615 = vmatmul.bf16.gmra.mxu0 %v395
        %v616 = vpop.f32.mrf.mxu0
        %v617 = vadd.f32 %v358, %v616
        %v618 = vpop.f32.mrf.mxu0
        %v619 = vadd.f32 %v363, %v618
        %620 = vmatmul.bf16.gmra.mxu0 %v398
        %v621 = vpop.f32.mrf.mxu0
        %v622 = vadd.f32 %v368, %v621
        %v623 = vpop.f32.mrf.mxu0
        %v624 = vadd.f32 %v373, %v623
        %625 = vdwg.mxu0
        %626 = vmatpush.bf16.msra.mxu0 %v549
        %627 = vmatpush.bf16.msra.mxu0 %v547
        %628 = vmatpush.bf16.msra.mxu0 %v545
        %629 = vmatpush.bf16.msra.mxu0 %v543
        %630 = vmatpush.bf16.msra.mxu0 %v541
        %631 = vmatpush.bf16.msra.mxu0 %v539
        %632 = vmatpush.bf16.msra.mxu0 %v537
        %633 = vmatpush.bf16.msra.mxu0 %v535
        %634 = vmatmul.bf16.gmra.mxu0 %v396
        %v635 = vpop.f32.mrf.mxu0
        %v636 = vadd.f32 %v617, %v635
        %v637 = vpop.f32.mrf.mxu0
        %v638 = vadd.f32 %v619, %v637
        %639 = vmatmul.bf16.gmra.mxu0 %v399
        %v640 = vpop.f32.mrf.mxu0
        %v641 = vadd.f32 %v622, %v640
        %v642 = vpop.f32.mrf.mxu0
        %v643 = vadd.f32 %v624, %v642
        %644 = vdwg.mxu0
        %645 = vmatpush.bf16.msra.mxu0 0
        %646 = vmatpush.bf16.msra.mxu0 0
        %647 = vmatpush.bf16.msra.mxu0 0
        %648 = vmatpush.bf16.msra.mxu0 0
        %649 = vmatpush.bf16.msra.mxu0 0
        %650 = vmatpush.bf16.msra.mxu0 %v602
        %651 = vmatpush.bf16.msra.mxu0 %v553
        %652 = vmatpush.bf16.msra.mxu0 %v551
        %653 = vmatmul.bf16.gmra.mxu0 %v595
        %v654 = vpop.f32.mrf.mxu0
        %v655 = vadd.f32 %v636, %v654
        %v656 = vpop.f32.mrf.mxu0
        %v657 = vadd.f32 %v638, %v656
        %658 = vmatmul.bf16.gmra.mxu0 %v598
        %v659 = vpop.f32.mrf.mxu0
        %v660 = vadd.f32 %v641, %v659
        %v661 = vpop.f32.mrf.mxu0
        %v662 = vadd.f32 %v643, %v661
        %663 = vdwg.mxu0
        %664 = vmatpush.bf16.msra.mxu0 %v534
        %665 = vmatpush.bf16.msra.mxu0 %v532
        %666 = vmatpush.bf16.msra.mxu0 %v530
        %667 = vmatpush.bf16.msra.mxu0 %v528
        %668 = vmatpush.bf16.msra.mxu0 %v526
        %669 = vmatpush.bf16.msra.mxu0 %v524
        %670 = vmatpush.bf16.msra.mxu0 %v522
        %671 = vmatpush.bf16.msra.mxu0 %v520
        %672 = vmatmul.bf16.gmra.mxu0 %v395
        %v673 = vpop.f32.mrf.mxu0
        %v674 = vadd.f32 %v358, %v673
        %v675 = vpop.f32.mrf.mxu0
        %v676 = vadd.f32 %v363, %v675
        %677 = vmatmul.bf16.gmra.mxu0 %v398
        %v678 = vpop.f32.mrf.mxu0
        %v679 = vadd.f32 %v368, %v678
        %v680 = vpop.f32.mrf.mxu0
        %v681 = vadd.f32 %v373, %v680
        %682 = vdwg.mxu0
        %683 = vmatpush.bf16.msra.mxu0 %v550
        %684 = vmatpush.bf16.msra.mxu0 %v548
        %685 = vmatpush.bf16.msra.mxu0 %v546
        %686 = vmatpush.bf16.msra.mxu0 %v544
        %687 = vmatpush.bf16.msra.mxu0 %v542
        %688 = vmatpush.bf16.msra.mxu0 %v540
        %689 = vmatpush.bf16.msra.mxu0 %v538
        %690 = vmatpush.bf16.msra.mxu0 %v536
        %691 = vmatmul.bf16.gmra.mxu0 %v396
        %v692 = vpop.f32.mrf.mxu0
        %v693 = vadd.f32 %v674, %v692
        %v694 = vpop.f32.mrf.mxu0
        %v695 = vadd.f32 %v676, %v694
        %696 = vmatmul.bf16.gmra.mxu0 %v399
        %v697 = vpop.f32.mrf.mxu0
        %v698 = vadd.f32 %v679, %v697
        %v699 = vpop.f32.mrf.mxu0
        %v700 = vadd.f32 %v681, %v699
        %701 = vdwg.mxu0
        %702 = vmatpush.bf16.msra.mxu0 0
        %703 = vmatpush.bf16.msra.mxu0 0
        %704 = vmatpush.bf16.msra.mxu0 0
        %705 = vmatpush.bf16.msra.mxu0 0
        %706 = vmatpush.bf16.msra.mxu0 0
        %707 = vmatpush.bf16.msra.mxu0 %v605
        %708 = vmatpush.bf16.msra.mxu0 %v554
        %709 = vmatpush.bf16.msra.mxu0 %v552
        %710 = vmatmul.bf16.gmra.mxu0 %v595
        %v711 = vpop.f32.mrf.mxu0
        %v712 = vadd.f32 %v693, %v711
        %v713 = vpop.f32.mrf.mxu0
        %v714 = vadd.f32 %v695, %v713
        %715 = vmatmul.bf16.gmra.mxu0 %v598
        %v716 = vpop.f32.mrf.mxu0
        %v717 = vadd.f32 %v698, %v716
        %v718 = vpop.f32.mrf.mxu0
        %v719 = vadd.f32 %v700, %v718
        %720 = vdwg.mxu0
        %v721 = vxor.u32 %v655, 2147483648
        %v722 = vxor.u32 %v712, 2147483648
        %v723 = vmul.f32 %v721, 1.442695
        %v724 = vpow.pop %v723
        %v725 = vmul.f32 %v722, 1.442695
        %v726 = vpow.pop %v725
        %v727 = vadd.f32 %v724, 1.0
        %v728 = vadd.f32 %v726, 1.0
        %v729 = vrcp.pop %v727
        %v730 = vmul.f32 %v727, %v729
        %v731 = vsub.f32 1.0, %v730
        %v732 = vmul.f32 %v729, %v731
        %v733 = vadd.f32 %v729, %v732
        %vm734 = vweird.f32 %v727
        %vm735 = vweird.f32 %v729
        %vm736 = vmor %vm734, %vm735
        %v737 = vsel %vm736, %v729, %v733
        %v738 = vand.u32 2147483647, %v727
        %vm739 = vcmp.eq.f32.partialorder %v738, 8.507059e+37
        %v740 = vand.u32 %v727, 2147483648
        %v741 = vor.u32 1.1754944e-38, %v740
        %v742 = vsel %vm739, %v741, %v737
        %v743 = vmul.f32 1.0, %v742
        %v744 = vrcp.pop %v728
        %v745 = vmul.f32 %v728, %v744
        %v746 = vsub.f32 1.0, %v745
        %v747 = vmul.f32 %v744, %v746
        %v748 = vadd.f32 %v744, %v747
        %vm749 = vweird.f32 %v728
        %vm750 = vweird.f32 %v744
        %vm751 = vmor %vm749, %vm750
        %v752 = vsel %vm751, %v744, %v748
        %v753 = vand.u32 2147483647, %v728
        %vm754 = vcmp.eq.f32.partialorder %v753, 8.507059e+37
        %v755 = vand.u32 %v728, 2147483648
        %v756 = vor.u32 1.1754944e-38, %v755
        %v757 = vsel %vm754, %v756, %v752
        %v758 = vmul.f32 1.0, %v757
        %v759 = vxor.u32 %v657, 2147483648
        %v760 = vxor.u32 %v714, 2147483648
        %v761 = vmul.f32 %v759, 1.442695
        %v762 = vpow.pop %v761
        %v763 = vmul.f32 %v760, 1.442695
        %v764 = vpow.pop %v763
        %v765 = vadd.f32 %v762, 1.0
        %v766 = vadd.f32 %v764, 1.0
        %v767 = vrcp.pop %v765
        %v768 = vmul.f32 %v765, %v767
        %v769 = vsub.f32 1.0, %v768
        %v770 = vmul.f32 %v767, %v769
        %v771 = vadd.f32 %v767, %v770
        %vm772 = vweird.f32 %v765
        %vm773 = vweird.f32 %v767
        %vm774 = vmor %vm772, %vm773
        %v775 = vsel %vm774, %v767, %v771
        %v776 = vand.u32 2147483647, %v765
        %vm777 = vcmp.eq.f32.partialorder %v776, 8.507059e+37
        %v778 = vand.u32 %v765, 2147483648
        %v779 = vor.u32 1.1754944e-38, %v778
        %v780 = vsel %vm777, %v779, %v775
        %v781 = vmul.f32 1.0, %v780
        %v782 = vrcp.pop %v766
        %v783 = vmul.f32 %v766, %v782
        %v784 = vsub.f32 1.0, %v783
        %v785 = vmul.f32 %v782, %v784
        %v786 = vadd.f32 %v782, %v785
        %vm787 = vweird.f32 %v766
        %vm788 = vweird.f32 %v782
        %vm789 = vmor %vm787, %vm788
        %v790 = vsel %vm789, %v782, %v786
        %v791 = vand.u32 2147483647, %v766
        %vm792 = vcmp.eq.f32.partialorder %v791, 8.507059e+37
        %v793 = vand.u32 %v766, 2147483648
        %v794 = vor.u32 1.1754944e-38, %v793
        %v795 = vsel %vm792, %v794, %v790
        %v796 = vmul.f32 1.0, %v795
        %v797 = vxor.u32 %v660, 2147483648
        %v798 = vxor.u32 %v717, 2147483648
        %v799 = vmul.f32 %v797, 1.442695
        %v800 = vpow.pop %v799
        %v801 = vmul.f32 %v798, 1.442695
        %v802 = vpow.pop %v801
        %v803 = vadd.f32 %v800, 1.0
        %v804 = vadd.f32 %v802, 1.0
        %v805 = vrcp.pop %v803
        %v806 = vmul.f32 %v803, %v805
        %v807 = vsub.f32 1.0, %v806
        %v808 = vmul.f32 %v805, %v807
        %v809 = vadd.f32 %v805, %v808
        %vm810 = vweird.f32 %v803
        %vm811 = vweird.f32 %v805
        %vm812 = vmor %vm810, %vm811
        %v813 = vsel %vm812, %v805, %v809
        %v814 = vand.u32 2147483647, %v803
        %vm815 = vcmp.eq.f32.partialorder %v814, 8.507059e+37
        %v816 = vand.u32 %v803, 2147483648
        %v817 = vor.u32 1.1754944e-38, %v816
        %v818 = vsel %vm815, %v817, %v813
        %v819 = vmul.f32 1.0, %v818
        %v820 = vrcp.pop %v804
        %v821 = vmul.f32 %v804, %v820
        %v822 = vsub.f32 1.0, %v821
        %v823 = vmul.f32 %v820, %v822
        %v824 = vadd.f32 %v820, %v823
        %vm825 = vweird.f32 %v804
        %vm826 = vweird.f32 %v820
        %vm827 = vmor %vm825, %vm826
        %v828 = vsel %vm827, %v820, %v824
        %v829 = vand.u32 2147483647, %v804
        %vm830 = vcmp.eq.f32.partialorder %v829, 8.507059e+37
        %v831 = vand.u32 %v804, 2147483648
        %v832 = vor.u32 1.1754944e-38, %v831
        %v833 = vsel %vm830, %v832, %v828
        %v834 = vmul.f32 1.0, %v833
        %v835 = vtanh.pop %v662
        %v836 = vtanh.pop %v719
        %v837 = vld [vmem:[%s300] sm:$0xff]
        %v838 = vld [vmem:[%s300 + $0x8] sm:$0xff]
        %v839 = vmul.f32 %v781, %v837
        %v840 = vmul.f32 %v796, %v838
        %v841 = vmul.f32 %v743, %v835
        %v842 = vmul.f32 %v758, %v836
        %v843 = vadd.f32 %v839, %v841
        %v844 = vadd.f32 %v840, %v842
        %v845 = vtanh.pop %v843
        %v846 = vtanh.pop %v844
        %v847 = vmul.f32 %v819, %v845
        %v848 = vmul.f32 %v834, %v846
        %849 = vst [vmem:[%s274] sm:$0xff] %v847
        %850 = vst [vmem:[%s274 + $0x8] sm:$0xff] %v848
        %851 = vst [vmem:[%s281] sm:$0xff] %v843
        %852 = vst [vmem:[%s281 + $0x8] sm:$0xff] %v844
        %s853 = sand.u32 %s143, 1
        %s854 = scalar_lea.sflag [#allocation3], %s853
        %s855 = sand.u32 %s143, 1
        %s856 = smul.addr %s855, 16
        %s857 = scalar_lea.vmem [#allocation2], %s856
        %s858 = sand.u32 %s171, 1
        %s859 = scalar_lea.sflag [#allocation5], %s858
        %s860 = sand.u32 %s171, 1
        %s861 = smul.addr %s860, 16
        %s862 = scalar_lea.vmem [#allocation4], %s861
        // Predicated region
        $region37: #{tpu_custom_call.1} parent=35 // pred_check
          %p863 = pneg %p153
        $region38: #{tpu_custom_call.1} parent=35 // pred_check_branch
          %865 = sbr.rel (%p863) target = $region40
        $region39: #{tpu_custom_call.1} parent=35 // pred_region
          %s866 = smul.u32 2, %s28
          %868 = vsyncadd %s854, 0
          %s869 = smul.addr %s27, 2
          %s870 = sadd.s32 %s866, %s869
          %s871 = smul.addr %s870, 8
          %s872 = scalar_lea.hbm %s4, %s871
          %s874 = sshll.u32 %s857, 4
          %s875 = int_to_ptr.vmem [resolvable:$true] %s874
          %s876 = sshll.u32 %s872, 4
          %s877 = int_to_ptr.hbm [resolvable:$true] %s876
          %879 = dma.vmem_to_hbm [thread:$0]  %s875, 256, %s877, %s854
        $region40: #{tpu_custom_call.1} parent=35 // pred_fallthru
          _
        // Predicated region
        $region41: #{tpu_custom_call.1} parent=35 // pred_check
          %p880 = pneg %p181
        $region42: #{tpu_custom_call.1} parent=35 // pred_check_branch
          %882 = sbr.rel (%p880) target = $region44
        $region43: #{tpu_custom_call.1} parent=35 // pred_region
          %s883 = smul.u32 2, %s28
          %885 = vsyncadd %s859, 0
          %s886 = smul.addr %s27, 2
          %s887 = sadd.s32 %s883, %s886
          %s888 = smul.addr %s887, 8
          %s889 = scalar_lea.hbm %s5, %s888
          %s891 = sshll.u32 %s862, 4
          %s892 = int_to_ptr.vmem [resolvable:$true] %s891
          %s893 = sshll.u32 %s889, 4
          %s894 = int_to_ptr.hbm [resolvable:$true] %s893
          %896 = dma.vmem_to_hbm [thread:$0]  %s892, 256, %s894, %s859
        $region44: #{tpu_custom_call.1} parent=35 // pred_fallthru
          _
      $region36: #{tpu_custom_call.1} parent=5 // pred_fallthru
        _
      %p897 = scmp.le.s32.totalorder 2, %s18
      // Predicated region
      $region45: #{tpu_custom_call.1} parent=5 // pred_check
        %p898 = pneg %p897
      $region46: #{tpu_custom_call.1} parent=5 // pred_check_branch
        %900 = sbr.rel (%p898) target = $region48
      $region47: #{tpu_custom_call.1} parent=5 // pred_region
        %s901 = ssub.s32 %s18, 2
        // Predicated region
        $region49: #{tpu_custom_call.1} parent=47 // pred_check
          %p902 = pneg %p159
        $region50: #{tpu_custom_call.1} parent=47 // pred_check_branch
          %904 = sbr.rel (%p902) target = $region52
        $region51: #{tpu_custom_call.1} parent=47 // pred_region
          %s905 = sand.u32 %s144, 1
          %s906 = scalar_lea.sflag [#allocation3], %s905
          %s907 = sand.u32 %s144, 1
          %s908 = smul.addr %s907, 16
          %s909 = scalar_lea.vmem [#allocation2], %s908
          %911 = dma.done %s906, 256
        $region52: #{tpu_custom_call.1} parent=47 // pred_fallthru
          _
        // Predicated region
        $region53: #{tpu_custom_call.1} parent=47 // pred_check
          %p912 = pneg %p187
        $region54: #{tpu_custom_call.1} parent=47 // pred_check_branch
          %914 = sbr.rel (%p912) target = $region56
        $region55: #{tpu_custom_call.1} parent=47 // pred_region
          %s915 = sand.u32 %s172, 1
          %s916 = scalar_lea.sflag [#allocation5], %s915
          %s917 = sand.u32 %s172, 1
          %s918 = smul.addr %s917, 16
          %s919 = scalar_lea.vmem [#allocation4], %s918
          %921 = dma.done %s916, 256
        $region56: #{tpu_custom_call.1} parent=47 // pred_fallthru
          _
      $region48: #{tpu_custom_call.1} parent=5 // pred_fallthru
        _
    $region6: #{tpu_custom_call.1} parent=1 // loop_footer
      %s22 = sadd.s32 1, %s18
    $region7: #{tpu_custom_call.1} parent=1 // loop_footer_branch
      %17 = sbr.rel target = $region3
    $region8: #{tpu_custom_call.1} parent=1 // loop_exit
      _
    %922 = vsyncpa [#allocation3], 1
    %s923 = scalar_lea.sflag [#allocation3], 1
    %924 = vsyncpa %s923, 1
    %925 = vsyncpa [#allocation5], 1
    %s926 = scalar_lea.sflag [#allocation5], 1
    %927 = vsyncpa %s926, 1

</llo_original>
